<compile_context>
chip_gen: v6e
topology: v6e:2x2x1
jax: 0.10.0
libtpu: 0.0.40
codegen_flags: <defaults>
</compile_context>

<pallas_src>
import jax
import jax.numpy as jnp
from jax.experimental import pallas as pl
from jax.experimental.pallas import tpu as pltpu

IN_DIM = 400
IN_PAD = 512          # 400 padded to a clean 4x128-lane K
HID = 128


def minimi_kernel(x_ref, w0_ref, b0_ref, w1_ref, b1_ref,
                  w2_ref, b2_ref, w3_ref, b3_ref, o_ref):
    bf16 = jnp.bfloat16
    x = x_ref[...]                                   # bf16 [block_b, IN_PAD]

    # lin -> relu (dropout = identity at inference); f32 accumulation + bias
    h0 = jnp.dot(x, w0_ref[...], preferred_element_type=jnp.float32) + b0_ref[...]
    h0 = jnp.maximum(h0, 0.0)

    # lin1 -> relu -> (+ residual); bf16 matmul operands, f32 elementwise
    h1 = jnp.dot(h0.astype(bf16), w1_ref[...],
                 preferred_element_type=jnp.float32) + b1_ref[...]
    h1 = jnp.maximum(h1, 0.0) + h0

    # lin2 -> relu -> (+ residual)
    h2 = jnp.dot(h1.astype(bf16), w2_ref[...],
                 preferred_element_type=jnp.float32) + b2_ref[...]
    h2 = jnp.maximum(h2, 0.0) + h1

    # final classifier head (lane-padded to 128)
    out = jnp.dot(h2.astype(bf16), w3_ref[...],
                  preferred_element_type=jnp.float32) + b3_ref[...]
    o_ref[...] = out.astype(o_ref.dtype)


def minimi_forward(x, params, *, block_b=512):
    """x: [B, 400] float32. params: dict of (in,out) f32 weights + (1,out) f32 biases."""
    B, in_dim = x.shape
    assert in_dim == IN_DIM
    n_classes = params["w3"].shape[1]
    out_pad = max(128, ((n_classes + 127) // 128) * 128)

    # Batch padding: clamp block to the (8-aligned) batch when B is small,
    # otherwise round the batch up to a multiple of block_b.
    if B < block_b:
        padded_b = ((B + 7) // 8) * 8
        block_b = padded_b
    else:
        padded_b = ((B + block_b - 1) // block_b) * block_b

    bf16 = jnp.bfloat16

    # Zero-pad x (rows: batch, cols: 400->512); pads contribute nothing.
    xp = jnp.zeros((padded_b, IN_PAD), bf16)
    xp = xp.at[:B, :IN_DIM].set(x.astype(bf16))

    # Weights in (in, out) layout, bf16 for the MXU; zero-pad where needed.
    w0 = jnp.zeros((IN_PAD, HID), bf16).at[:IN_DIM, :].set(params["w0"].astype(bf16))
    w1 = params["w1"].astype(bf16)
    w2 = params["w2"].astype(bf16)
    w3 = jnp.zeros((HID, out_pad), bf16).at[:, :n_classes].set(params["w3"].astype(bf16))

    # Biases stay f32 (elementwise path); pad the head bias lanes with zeros.
    b0 = params["b0"].astype(jnp.float32)
    b1 = params["b1"].astype(jnp.float32)
    b2 = params["b2"].astype(jnp.float32)
    b3 = jnp.zeros((1, out_pad), jnp.float32).at[:, :n_classes].set(
        params["b3"].astype(jnp.float32))

    grid = (padded_b // block_b,)

    def rep(shape):
        # parameter blocks are the full arrays, replicated across the batch grid
        return pl.BlockSpec(shape, lambda i, _n=len(shape): (0,) * _n)

    cost = pl.CostEstimate(
        flops=2 * padded_b * (IN_PAD * HID + HID * HID + HID * HID + HID * out_pad),
        transcendentals=0,
        bytes_accessed=(padded_b * IN_PAD * 2 + padded_b * out_pad * 4
                        + (IN_PAD * HID + 2 * HID * HID + HID * out_pad) * 2
                        + (3 * HID + out_pad) * 4),
    )

    out = pl.pallas_call(
        minimi_kernel,
        out_shape=jax.ShapeDtypeStruct((padded_b, out_pad), jnp.float32),
        grid_spec=pltpu.PrefetchScalarGridSpec(
            num_scalar_prefetch=0,
            grid=grid,
            in_specs=[
                pl.BlockSpec((block_b, IN_PAD), lambda i: (i, 0)),   # x
                rep((IN_PAD, HID)), rep((1, HID)),                   # lin
                rep((HID, HID)),    rep((1, HID)),                   # lin1
                rep((HID, HID)),    rep((1, HID)),                   # lin2
                rep((HID, out_pad)), rep((1, out_pad)),              # li (padded head)
            ],
            out_specs=pl.BlockSpec((block_b, out_pad), lambda i: (i, 0)),
        ),
        compiler_params=pltpu.CompilerParams(
            dimension_semantics=("parallel",)),
        cost_estimate=cost,
    )(xp, w0, b0, w1, b1, w2, b2, w3, b3)

    return out[:B, :n_classes]


def init_params(key, n_classes):
    """Deterministic PyTorch-style (uniform +/- 1/sqrt(fan_in)) init, stored as (in,out)."""
    def linear(k, fan_in, fan_out):
        kw, kb = jax.random.split(k)
        bound = 1.0 / jnp.sqrt(fan_in)
        w = jax.random.uniform(kw, (fan_in, fan_out), jnp.float32, -bound, bound)
        b = jax.random.uniform(kb, (1, fan_out), jnp.float32, -bound, bound)
        return w, b

    k0, k1, k2, k3 = jax.random.split(key, 4)
    w0, b0 = linear(k0, IN_DIM, HID)
    w1, b1 = linear(k1, HID, HID)
    w2, b2 = linear(k2, HID, HID)
    w3, b3 = linear(k3, HID, n_classes)
    return dict(w0=w0, b0=b0, w1=w1, b1=b1, w2=w2, b2=b2, w3=w3, b3=b3)


def reference_forward(x, p):
    """Pure-JAX reference mimicking the kernel's bf16-operand / f32-accum math."""
    bf16 = jnp.bfloat16

    def lin(h, w, b):
        return jnp.dot(h.astype(bf16), w.astype(bf16),
                       preferred_element_type=jnp.float32) + b

    h0 = jnp.maximum(lin(x, p["w0"], p["b0"]), 0.0)
    h1 = jnp.maximum(lin(h0, p["w1"], p["b1"]), 0.0) + h0
    h2 = jnp.maximum(lin(h1, p["w2"], p["b2"]), 0.0) + h1
    return lin(h2, p["w3"], p["b3"])


if __name__ == "__main__":
    n_classes = 10
    batch = 16   # small test batch; wrapper pads/clamps the block automatically

    key = jax.random.PRNGKey(0)
    kx, kp = jax.random.split(key)
    x = jax.random.normal(kx, (batch, IN_DIM), jnp.float32)
    params = init_params(kp, n_classes)

    out = minimi_forward(x, params)
    out = jax.block_until_ready(out)

    ref = reference_forward(x, params)
    ref_f32 = jnp.maximum(x @ params["w0"] + params["b0"], 0.0)
    ref_f32 = jnp.maximum(ref_f32 @ params["w1"] + params["b1"], 0.0) + ref_f32
    ref_f32 = jnp.maximum(ref_f32 @ params["w2"] + params["b2"], 0.0) + ref_f32
    ref_f32 = ref_f32 @ params["w3"] + params["b3"]

    assert out.shape == (batch, n_classes)
    assert jnp.allclose(out, ref, atol=2e-2, rtol=2e-2), "mismatch vs bf16 JAX reference"
    assert jnp.allclose(out, ref_f32, atol=1e-1, rtol=1e-1), "mismatch vs f32 JAX reference"

    print("KERNEL_OK")
</pallas_src>

<mosaic_0001>
module attributes {stable_mosaic.version = 11 : i64} {
  func.func @minimi_kernel(%arg0: i32, %arg1: memref<16x512xbf16, #tpu.memory_space<vmem>>, %arg2: memref<512x128xbf16, #tpu.memory_space<vmem>>, %arg3: memref<1x128xf32, #tpu.memory_space<vmem>>, %arg4: memref<128x128xbf16, #tpu.memory_space<vmem>>, %arg5: memref<1x128xf32, #tpu.memory_space<vmem>>, %arg6: memref<128x128xbf16, #tpu.memory_space<vmem>>, %arg7: memref<1x128xf32, #tpu.memory_space<vmem>>, %arg8: memref<128x128xbf16, #tpu.memory_space<vmem>>, %arg9: memref<1x128xf32, #tpu.memory_space<vmem>>, %arg10: memref<16x128xf32, #tpu.memory_space<vmem>>) attributes {dimension_semantics = [#tpu.dimension_semantics<parallel>], iteration_bounds = array<i64: 1>, scalar_prefetch = 0 : i64, scratch_operands = 0 : i64, tpu.core_type = #tpu.core_type<tc>, window_params = [{transform_indices = @transform_0, window_bounds = array<i64: 16, 512>}, {pipeline_mode = #tpu.pipeline_mode<synchronous>, transform_indices = @transform_1, window_bounds = array<i64: 512, 128>}, {pipeline_mode = #tpu.pipeline_mode<synchronous>, transform_indices = @transform_2, window_bounds = array<i64: 1, 128>}, {pipeline_mode = #tpu.pipeline_mode<synchronous>, transform_indices = @transform_3, window_bounds = array<i64: 128, 128>}, {pipeline_mode = #tpu.pipeline_mode<synchronous>, transform_indices = @transform_4, window_bounds = array<i64: 1, 128>}, {pipeline_mode = #tpu.pipeline_mode<synchronous>, transform_indices = @transform_5, window_bounds = array<i64: 128, 128>}, {pipeline_mode = #tpu.pipeline_mode<synchronous>, transform_indices = @transform_6, window_bounds = array<i64: 1, 128>}, {pipeline_mode = #tpu.pipeline_mode<synchronous>, transform_indices = @transform_7, window_bounds = array<i64: 128, 128>}, {pipeline_mode = #tpu.pipeline_mode<synchronous>, transform_indices = @transform_8, window_bounds = array<i64: 1, 128>}, {transform_indices = @transform_9, window_bounds = array<i64: 16, 128>}]} {
    %c0 = arith.constant 0 : index
    %c0_0 = arith.constant 0 : index
    %0 = vector.load %arg1[%c0, %c0_0] : memref<16x512xbf16, #tpu.memory_space<vmem>>, vector<16x512xbf16>
    %c0_1 = arith.constant 0 : index
    %c0_2 = arith.constant 0 : index
    %1 = vector.load %arg2[%c0_1, %c0_2] : memref<512x128xbf16, #tpu.memory_space<vmem>>, vector<512x128xbf16>
    %cst = arith.constant dense<0.000000e+00> : vector<16x128xf32>
    %2 = tpu.matmul %0, %1, %cst {dimension_numbers = #tpu.dot_dimension_numbers<[1], [0], [0], [1], [0, 0, 1, 1], [], []>} : vector<16x512xbf16>, vector<512x128xbf16>, vector<16x128xf32> -> vector<16x128xf32>
    %c0_3 = arith.constant 0 : index
    %c0_4 = arith.constant 0 : index
    %3 = vector.load %arg3[%c0_3, %c0_4] : memref<1x128xf32, #tpu.memory_space<vmem>>, vector<1x128xf32>
    %4 = vector.broadcast %3 : vector<1x128xf32> to vector<16x128xf32>
    %5 = arith.addf %2, %4 : vector<16x128xf32>
    %cst_5 = arith.constant 0.000000e+00 : f32
    %6 = vector.broadcast %cst_5 : f32 to vector<16x128xf32>
    %7 = arith.maximumf %5, %6 : vector<16x128xf32>
    %8 = arith.truncf %7 : vector<16x128xf32> to vector<16x128xbf16>
    %c0_6 = arith.constant 0 : index
    %c0_7 = arith.constant 0 : index
    %9 = vector.load %arg4[%c0_6, %c0_7] : memref<128x128xbf16, #tpu.memory_space<vmem>>, vector<128x128xbf16>
    %cst_8 = arith.constant dense<0.000000e+00> : vector<16x128xf32>
    %10 = tpu.matmul %8, %9, %cst_8 {dimension_numbers = #tpu.dot_dimension_numbers<[1], [0], [0], [1], [0, 0, 1, 1], [], []>} : vector<16x128xbf16>, vector<128x128xbf16>, vector<16x128xf32> -> vector<16x128xf32>
    %c0_9 = arith.constant 0 : index
    %c0_10 = arith.constant 0 : index
    %11 = vector.load %arg5[%c0_9, %c0_10] : memref<1x128xf32, #tpu.memory_space<vmem>>, vector<1x128xf32>
    %12 = vector.broadcast %11 : vector<1x128xf32> to vector<16x128xf32>
    %13 = arith.addf %10, %12 : vector<16x128xf32>
    %cst_11 = arith.constant 0.000000e+00 : f32
    %14 = vector.broadcast %cst_11 : f32 to vector<16x128xf32>
    %15 = arith.maximumf %13, %14 : vector<16x128xf32>
    %16 = arith.addf %15, %7 : vector<16x128xf32>
    %17 = arith.truncf %16 : vector<16x128xf32> to vector<16x128xbf16>
    %c0_12 = arith.constant 0 : index
    %c0_13 = arith.constant 0 : index
    %18 = vector.load %arg6[%c0_12, %c0_13] : memref<128x128xbf16, #tpu.memory_space<vmem>>, vector<128x128xbf16>
    %cst_14 = arith.constant dense<0.000000e+00> : vector<16x128xf32>
    %19 = tpu.matmul %17, %18, %cst_14 {dimension_numbers = #tpu.dot_dimension_numbers<[1], [0], [0], [1], [0, 0, 1, 1], [], []>} : vector<16x128xbf16>, vector<128x128xbf16>, vector<16x128xf32> -> vector<16x128xf32>
    %c0_15 = arith.constant 0 : index
    %c0_16 = arith.constant 0 : index
    %20 = vector.load %arg7[%c0_15, %c0_16] : memref<1x128xf32, #tpu.memory_space<vmem>>, vector<1x128xf32>
    %21 = vector.broadcast %20 : vector<1x128xf32> to vector<16x128xf32>
    %22 = arith.addf %19, %21 : vector<16x128xf32>
    %cst_17 = arith.constant 0.000000e+00 : f32
    %23 = vector.broadcast %cst_17 : f32 to vector<16x128xf32>
    %24 = arith.maximumf %22, %23 : vector<16x128xf32>
    %25 = arith.addf %24, %16 : vector<16x128xf32>
    %26 = arith.truncf %25 : vector<16x128xf32> to vector<16x128xbf16>
    %c0_18 = arith.constant 0 : index
    %c0_19 = arith.constant 0 : index
    %27 = vector.load %arg8[%c0_18, %c0_19] : memref<128x128xbf16, #tpu.memory_space<vmem>>, vector<128x128xbf16>
    %cst_20 = arith.constant dense<0.000000e+00> : vector<16x128xf32>
    %28 = tpu.matmul %26, %27, %cst_20 {dimension_numbers = #tpu.dot_dimension_numbers<[1], [0], [0], [1], [0, 0, 1, 1], [], []>} : vector<16x128xbf16>, vector<128x128xbf16>, vector<16x128xf32> -> vector<16x128xf32>
    %c0_21 = arith.constant 0 : index
    %c0_22 = arith.constant 0 : index
    %29 = vector.load %arg9[%c0_21, %c0_22] : memref<1x128xf32, #tpu.memory_space<vmem>>, vector<1x128xf32>
    %30 = vector.broadcast %29 : vector<1x128xf32> to vector<16x128xf32>
    %31 = arith.addf %28, %30 : vector<16x128xf32>
    %c0_23 = arith.constant 0 : index
    %c0_24 = arith.constant 0 : index
    %32 = vector.load %arg10[%c0_23, %c0_24] : memref<16x128xf32, #tpu.memory_space<vmem>>, vector<16x128xf32>
    tpu.vector_store %arg10[%c0_23, %c0_24], %31 {strides = array<i32>} : memref<16x128xf32, #tpu.memory_space<vmem>>, vector<16x128xf32>,
    return
  }
  func.func @transform_0(%arg0: i32) -> (i32, i32) {
    %c0_i32 = arith.constant 0 : i32
    %c0_i32_0 = arith.constant 0 : i32
    return %arg0, %c0_i32 : i32, i32
  }
  func.func @transform_1(%arg0: i32) -> (i32, i32) {
    %c0_i32 = arith.constant 0 : i32
    %c0_i32_0 = arith.constant 0 : i32
    %c0_i32_1 = arith.constant 0 : i32
    return %c0_i32, %c0_i32_0 : i32, i32
  }
  func.func @transform_2(%arg0: i32) -> (i32, i32) {
    %c0_i32 = arith.constant 0 : i32
    %c0_i32_0 = arith.constant 0 : i32
    %c0_i32_1 = arith.constant 0 : i32
    return %c0_i32, %c0_i32_0 : i32, i32
  }
  func.func @transform_3(%arg0: i32) -> (i32, i32) {
    %c0_i32 = arith.constant 0 : i32
    %c0_i32_0 = arith.constant 0 : i32
    %c0_i32_1 = arith.constant 0 : i32
    return %c0_i32, %c0_i32_0 : i32, i32
  }
  func.func @transform_4(%arg0: i32) -> (i32, i32) {
    %c0_i32 = arith.constant 0 : i32
    %c0_i32_0 = arith.constant 0 : i32
    %c0_i32_1 = arith.constant 0 : i32
    return %c0_i32, %c0_i32_0 : i32, i32
  }
  func.func @transform_5(%arg0: i32) -> (i32, i32) {
    %c0_i32 = arith.constant 0 : i32
    %c0_i32_0 = arith.constant 0 : i32
    %c0_i32_1 = arith.constant 0 : i32
    return %c0_i32, %c0_i32_0 : i32, i32
  }
  func.func @transform_6(%arg0: i32) -> (i32, i32) {
    %c0_i32 = arith.constant 0 : i32
    %c0_i32_0 = arith.constant 0 : i32
    %c0_i32_1 = arith.constant 0 : i32
    return %c0_i32, %c0_i32_0 : i32, i32
  }
  func.func @transform_7(%arg0: i32) -> (i32, i32) {
    %c0_i32 = arith.constant 0 : i32
    %c0_i32_0 = arith.constant 0 : i32
    %c0_i32_1 = arith.constant 0 : i32
    return %c0_i32, %c0_i32_0 : i32, i32
  }
  func.func @transform_8(%arg0: i32) -> (i32, i32) {
    %c0_i32 = arith.constant 0 : i32
    %c0_i32_0 = arith.constant 0 : i32
    %c0_i32_1 = arith.constant 0 : i32
    return %c0_i32, %c0_i32_0 : i32, i32
  }
  func.func @transform_9(%arg0: i32) -> (i32, i32) {
    %c0_i32 = arith.constant 0 : i32
    %c0_i32_0 = arith.constant 0 : i32
    return %arg0, %c0_i32 : i32, i32
  }
}

</mosaic_0001>

<llo_original>
// kernel: tpu_custom_call.1
$region0: #{tpu_custom_call.1}
  #allocation0 [shape = 'u32[]', space=smem, size = 0x4, offset = 0x4, fixed_abs, tag = 'smem constant byte address 0x4 - core index']
  #allocation1 [shape = 'u32[144,128]{1,0:T(1,128)}', space=vmem, size = 0x12000, scoped, tag = 'internal scratch']
  %s0 = inlined_call_operand.hbm [shape: bf16[16,512], index: 0, kind: input, shape index: {}]
  %s1 = inlined_call_operand.hbm [shape: bf16[512,128], index: 1, kind: input, shape index: {}]
  %s2 = inlined_call_operand.vmem [shape: f32[1,128], index: 2, kind: input, shape index: {}]
  %s3 = inlined_call_operand.hbm [shape: bf16[128,128], index: 3, kind: input, shape index: {}]
  %s4 = inlined_call_operand.vmem [shape: f32[1,128], index: 4, kind: input, shape index: {}]
  %s5 = inlined_call_operand.hbm [shape: bf16[128,128], index: 5, kind: input, shape index: {}]
  %s6 = inlined_call_operand.vmem [shape: f32[1,128], index: 6, kind: input, shape index: {}]
  %s7 = inlined_call_operand.hbm [shape: bf16[128,128], index: 7, kind: input, shape index: {}]
  %s8 = inlined_call_operand.vmem [shape: f32[1,128], index: 8, kind: input, shape index: {}]
  %s9 = inlined_call_operand.hbm [shape: f32[16,128], index: 9, kind: output, shape index: {}]
  %s10 = sld [smem:[#allocation0]]
  $region66: #{tpu_custom_call.1} parent=0
    _
  %s12 = ssub.s32 1, %s10
  %s13 = scalar_select 0, %s12, %s10
  $region1: #{tpu_custom_call.1} parent=0
    #allocation2 [shape = 'u8[16384]{0}', space=vmem, size = 0x4000, scoped, tag = 'input window, operand 0, single buffered']
    #allocation3 [shape = 's32[1]{0}', space=sflag, size = 0x4, scoped, tag = 'scoped memory for tpu_custom_call.1']
    #allocation4 [shape = 's32[1]{0}', space=sflag, size = 0x4, scoped, tag = 'scoped memory for tpu_custom_call.1']
    #allocation5 [shape = 'u8[131072]{0}', space=vmem, size = 0x20000, scoped, tag = 'input window, operand 1, single buffered']
    #allocation6 [shape = 's32[1]{0}', space=sflag, size = 0x4, scoped, tag = 'scoped memory for tpu_custom_call.1']
    #allocation7 [shape = 'u8[32768]{0}', space=vmem, size = 0x8000, scoped, tag = 'input window, operand 3, single buffered']
    #allocation8 [shape = 'u8[32768]{0}', space=vmem, size = 0x8000, scoped, tag = 'input window, operand 5, single buffered']
    #allocation9 [shape = 's32[1]{0}', space=sflag, size = 0x4, scoped, tag = 'scoped memory for tpu_custom_call.1']
    #allocation10 [shape = 'u8[32768]{0}', space=vmem, size = 0x8000, scoped, tag = 'input window, operand 7, single buffered']
    #allocation11 [shape = 'u8[8192]{0}', space=vmem, size = 0x2000, scoped, tag = 'output window, operand 0, single buffered']
    %14 = vsyncpa [#allocation3], 0
    %15 = vsyncpa [#allocation6], 0
    %16 = vsyncpa [#allocation9], 0
    %17 = vsyncpa [#allocation4], 0
    // Predicated region
    $region2: #{tpu_custom_call.1} parent=1 // pred_check
      _
    $region3: #{tpu_custom_call.1} parent=1 // pred_check_branch
      %19 = sbr.rel (0) target = $region5
    $region4: #{tpu_custom_call.1} parent=1 // pred_region
      %s21 = ssub.s32 512, 512
      %22 = vsyncadd [#allocation3], %s21
      %s23 = sshll.u32 [#allocation2], 4
      %s24 = int_to_ptr.vmem [resolvable:$true] %s23
      %29 = dma.hbm_to_vmem [thread:$0]  %s0, 512, %s24, [#allocation3], 256, 256, 16
    $region5: #{tpu_custom_call.1} parent=1 // pred_fallthru
      _
    // Predicated region
    $region6: #{tpu_custom_call.1} parent=1 // pred_check
      _
    $region7: #{tpu_custom_call.1} parent=1 // pred_check_branch
      %31 = sbr.rel (0) target = $region9
    $region8: #{tpu_custom_call.1} parent=1 // pred_region
      %s33 = ssub.s32 4096, 4096
      %34 = vsyncadd [#allocation6], %s33
      %s35 = sshll.u32 [#allocation5], 4
      %s36 = int_to_ptr.vmem [resolvable:$true] %s35
      %41 = dma.hbm_to_vmem [thread:$0]  %s1, 4096, %s36, [#allocation6], 64, 64, 4
    $region9: #{tpu_custom_call.1} parent=1 // pred_fallthru
      _
    // Predicated region
    $region10: #{tpu_custom_call.1} parent=1 // pred_check
      _
    $region11: #{tpu_custom_call.1} parent=1 // pred_check_branch
      %43 = sbr.rel (0) target = $region13
    $region12: #{tpu_custom_call.1} parent=1 // pred_region
      _
    $region13: #{tpu_custom_call.1} parent=1 // pred_fallthru
      _
    // Predicated region
    $region14: #{tpu_custom_call.1} parent=1 // pred_check
      _
    $region15: #{tpu_custom_call.1} parent=1 // pred_check_branch
      %45 = sbr.rel (0) target = $region17
    $region16: #{tpu_custom_call.1} parent=1 // pred_region
      %s47 = ssub.s32 1024, 1024
      %48 = vsyncadd [#allocation6], %s47
      %s49 = sshll.u32 [#allocation7], 4
      %s50 = int_to_ptr.vmem [resolvable:$true] %s49
      %55 = dma.hbm_to_vmem [thread:$0]  %s3, 1024, %s50, [#allocation6], 64, 64, 4
    $region17: #{tpu_custom_call.1} parent=1 // pred_fallthru
      _
    // Predicated region
    $region18: #{tpu_custom_call.1} parent=1 // pred_check
      _
    $region19: #{tpu_custom_call.1} parent=1 // pred_check_branch
      %57 = sbr.rel (0) target = $region21
    $region20: #{tpu_custom_call.1} parent=1 // pred_region
      _
    $region21: #{tpu_custom_call.1} parent=1 // pred_fallthru
      _
    // Predicated region
    $region22: #{tpu_custom_call.1} parent=1 // pred_check
      _
    $region23: #{tpu_custom_call.1} parent=1 // pred_check_branch
      %59 = sbr.rel (0) target = $region25
    $region24: #{tpu_custom_call.1} parent=1 // pred_region
      %s61 = ssub.s32 1024, 1024
      %62 = vsyncadd [#allocation9], %s61
      %s63 = sshll.u32 [#allocation8], 4
      %s64 = int_to_ptr.vmem [resolvable:$true] %s63
      %69 = dma.hbm_to_vmem [thread:$0]  %s5, 1024, %s64, [#allocation9], 64, 64, 4
    $region25: #{tpu_custom_call.1} parent=1 // pred_fallthru
      _
    // Predicated region
    $region26: #{tpu_custom_call.1} parent=1 // pred_check
      _
    $region27: #{tpu_custom_call.1} parent=1 // pred_check_branch
      %71 = sbr.rel (0) target = $region29
    $region28: #{tpu_custom_call.1} parent=1 // pred_region
      _
    $region29: #{tpu_custom_call.1} parent=1 // pred_fallthru
      _
    // Predicated region
    $region30: #{tpu_custom_call.1} parent=1 // pred_check
      _
    $region31: #{tpu_custom_call.1} parent=1 // pred_check_branch
      %73 = sbr.rel (0) target = $region33
    $region32: #{tpu_custom_call.1} parent=1 // pred_region
      %s75 = ssub.s32 1024, 1024
      %76 = vsyncadd [#allocation9], %s75
      %s77 = sshll.u32 [#allocation10], 4
      %s78 = int_to_ptr.vmem [resolvable:$true] %s77
      %83 = dma.hbm_to_vmem [thread:$0]  %s7, 1024, %s78, [#allocation9], 64, 64, 4
    $region33: #{tpu_custom_call.1} parent=1 // pred_fallthru
      _
    // Predicated region
    $region34: #{tpu_custom_call.1} parent=1 // pred_check
      _
    $region35: #{tpu_custom_call.1} parent=1 // pred_check_branch
      %85 = sbr.rel (0) target = $region37
    $region36: #{tpu_custom_call.1} parent=1 // pred_region
      _
    $region37: #{tpu_custom_call.1} parent=1 // pred_fallthru
      _
    // Predicated region
    $region38: #{tpu_custom_call.1} parent=1 // pred_check
      _
    $region39: #{tpu_custom_call.1} parent=1 // pred_check_branch
      %87 = sbr.rel (0) target = $region41
    $region40: #{tpu_custom_call.1} parent=1 // pred_region
      %88 = dma.done [#allocation3], 512
    $region41: #{tpu_custom_call.1} parent=1 // pred_fallthru
      _
    // Predicated region
    $region42: #{tpu_custom_call.1} parent=1 // pred_check
      _
    $region43: #{tpu_custom_call.1} parent=1 // pred_check_branch
      %90 = sbr.rel (0) target = $region45
    $region44: #{tpu_custom_call.1} parent=1 // pred_region
      %91 = dma.done [#allocation6], 4096
    $region45: #{tpu_custom_call.1} parent=1 // pred_fallthru
      _
    // Predicated region
    $region46: #{tpu_custom_call.1} parent=1 // pred_check
      _
    $region47: #{tpu_custom_call.1} parent=1 // pred_check_branch
      %93 = sbr.rel (0) target = $region49
    $region48: #{tpu_custom_call.1} parent=1 // pred_region
      %94 = dma.done [#allocation6], 1024
    $region49: #{tpu_custom_call.1} parent=1 // pred_fallthru
      _
    // Predicated region
    $region50: #{tpu_custom_call.1} parent=1 // pred_check
      _
    $region51: #{tpu_custom_call.1} parent=1 // pred_check_branch
      %96 = sbr.rel (0) target = $region53
    $region52: #{tpu_custom_call.1} parent=1 // pred_region
      %97 = dma.done [#allocation9], 1024
    $region53: #{tpu_custom_call.1} parent=1 // pred_fallthru
      _
    // Predicated region
    $region54: #{tpu_custom_call.1} parent=1 // pred_check
      _
    $region55: #{tpu_custom_call.1} parent=1 // pred_check_branch
      %99 = sbr.rel (0) target = $region57
    $region56: #{tpu_custom_call.1} parent=1 // pred_region
      %100 = dma.done [#allocation9], 1024
    $region57: #{tpu_custom_call.1} parent=1 // pred_fallthru
      _
    %v102 = vld [vmem:[#allocation2] sm:$0xff]
    %v103 = vld [vmem:[#allocation2 + $0x8] sm:$0xff]
    %v104 = vld [vmem:[#allocation2 + $0x10] sm:$0xff]
    %v105 = vld [vmem:[#allocation2 + $0x18] sm:$0xff]
    %v106 = vld [vmem:[#allocation5] sm:$0xf]
    %v107 = vld [vmem:[#allocation5 + $0x4] sm:$0xf]
    %v108 = vld [vmem:[#allocation5 + $0x8] sm:$0xf]
    %v109 = vld [vmem:[#allocation5 + $0xc] sm:$0xf]
    %v110 = vld [vmem:[#allocation5 + $0x10] sm:$0xf]
    %v111 = vld [vmem:[#allocation5 + $0x14] sm:$0xf]
    %v112 = vld [vmem:[#allocation5 + $0x18] sm:$0xf]
    %v113 = vld [vmem:[#allocation5 + $0x1c] sm:$0xf]
    %v114 = vld [vmem:[#allocation5 + $0x20] sm:$0xf]
    %v115 = vld [vmem:[#allocation5 + $0x24] sm:$0xf]
    %v116 = vld [vmem:[#allocation5 + $0x28] sm:$0xf]
    %v117 = vld [vmem:[#allocation5 + $0x2c] sm:$0xf]
    %v118 = vld [vmem:[#allocation5 + $0x30] sm:$0xf]
    %v119 = vld [vmem:[#allocation5 + $0x34] sm:$0xf]
    %v120 = vld [vmem:[#allocation5 + $0x38] sm:$0xf]
    %v121 = vld [vmem:[#allocation5 + $0x3c] sm:$0xf]
    %v122 = vld [vmem:[#allocation5 + $0x40] sm:$0xf]
    %v123 = vld [vmem:[#allocation5 + $0x44] sm:$0xf]
    %v124 = vld [vmem:[#allocation5 + $0x48] sm:$0xf]
    %v125 = vld [vmem:[#allocation5 + $0x4c] sm:$0xf]
    %v126 = vld [vmem:[#allocation5 + $0x50] sm:$0xf]
    %v127 = vld [vmem:[#allocation5 + $0x54] sm:$0xf]
    %v128 = vld [vmem:[#allocation5 + $0x58] sm:$0xf]
    %v129 = vld [vmem:[#allocation5 + $0x5c] sm:$0xf]
    %v130 = vld [vmem:[#allocation5 + $0x60] sm:$0xf]
    %v131 = vld [vmem:[#allocation5 + $0x64] sm:$0xf]
    %v132 = vld [vmem:[#allocation5 + $0x68] sm:$0xf]
    %v133 = vld [vmem:[#allocation5 + $0x6c] sm:$0xf]
    %v134 = vld [vmem:[#allocation5 + $0x70] sm:$0xf]
    %v135 = vld [vmem:[#allocation5 + $0x74] sm:$0xf]
    %v136 = vld [vmem:[#allocation5 + $0x78] sm:$0xf]
    %v137 = vld [vmem:[#allocation5 + $0x7c] sm:$0xf]
    %v138 = vld [vmem:[#allocation5 + $0x80] sm:$0xf]
    %v139 = vld [vmem:[#allocation5 + $0x84] sm:$0xf]
    %v140 = vld [vmem:[#allocation5 + $0x88] sm:$0xf]
    %v141 = vld [vmem:[#allocation5 + $0x8c] sm:$0xf]
    %v142 = vld [vmem:[#allocation5 + $0x90] sm:$0xf]
    %v143 = vld [vmem:[#allocation5 + $0x94] sm:$0xf]
    %v144 = vld [vmem:[#allocation5 + $0x98] sm:$0xf]
    %v145 = vld [vmem:[#allocation5 + $0x9c] sm:$0xf]
    %v146 = vld [vmem:[#allocation5 + $0xa0] sm:$0xf]
    %v147 = vld [vmem:[#allocation5 + $0xa4] sm:$0xf]
    %v148 = vld [vmem:[#allocation5 + $0xa8] sm:$0xf]
    %v149 = vld [vmem:[#allocation5 + $0xac] sm:$0xf]
    %v150 = vld [vmem:[#allocation5 + $0xb0] sm:$0xf]
    %v151 = vld [vmem:[#allocation5 + $0xb4] sm:$0xf]
    %v152 = vld [vmem:[#allocation5 + $0xb8] sm:$0xf]
    %v153 = vld [vmem:[#allocation5 + $0xbc] sm:$0xf]
    %v154 = vld [vmem:[#allocation5 + $0xc0] sm:$0xf]
    %v155 = vld [vmem:[#allocation5 + $0xc4] sm:$0xf]
    %v156 = vld [vmem:[#allocation5 + $0xc8] sm:$0xf]
    %v157 = vld [vmem:[#allocation5 + $0xcc] sm:$0xf]
    %v158 = vld [vmem:[#allocation5 + $0xd0] sm:$0xf]
    %v159 = vld [vmem:[#allocation5 + $0xd4] sm:$0xf]
    %v160 = vld [vmem:[#allocation5 + $0xd8] sm:$0xf]
    %v161 = vld [vmem:[#allocation5 + $0xdc] sm:$0xf]
    %v162 = vld [vmem:[#allocation5 + $0xe0] sm:$0xf]
    %v163 = vld [vmem:[#allocation5 + $0xe4] sm:$0xf]
    %v164 = vld [vmem:[#allocation5 + $0xe8] sm:$0xf]
    %v165 = vld [vmem:[#allocation5 + $0xec] sm:$0xf]
    %v166 = vld [vmem:[#allocation5 + $0xf0] sm:$0xf]
    %v167 = vld [vmem:[#allocation5 + $0xf4] sm:$0xf]
    %v168 = vld [vmem:[#allocation5 + $0xf8] sm:$0xf]
    %v169 = vld [vmem:[#allocation5 + $0xfc] sm:$0xf]
    %v170 = vld [vmem:[%s2] sm:$0x1]
    %v172 = vlaneseq
    %v173 = vshrl.u32 %v172, 7
    %v174 = vsub.s32 0, %v173
    %v175 = vrot.slane %v170, %v174
    %v181 = vunpack.c.l.b16 %v102
    %v182 = vunpack.c.h.b16 %v102
    %v183 = vunpack.c.l.b16 %v103
    %v184 = vunpack.c.h.b16 %v103
    %v185 = vunpack.c.l.b16 %v104
    %v186 = vunpack.c.h.b16 %v104
    %v187 = vunpack.c.l.b16 %v105
    %v188 = vunpack.c.h.b16 %v105
    %v189 = vpack.c.b16 %v185, %v181
    %v190 = vpack.c.b16 %v186, %v182
    %v191 = vpack.c.b16 %v187, %v183
    %v192 = vpack.c.b16 %v188, %v184
    %v261 = vunpack.c.l.b16 %v106
    %v262 = vunpack.c.l.b16 %v107
    %v263 = vunpack.c.l.b16 %v108
    %v264 = vunpack.c.l.b16 %v109
    %v265 = vunpack.c.l.b16 %v110
    %v266 = vunpack.c.l.b16 %v111
    %v267 = vunpack.c.l.b16 %v112
    %v268 = vunpack.c.l.b16 %v113
    %v269 = vunpack.c.l.b16 %v114
    %v270 = vunpack.c.l.b16 %v115
    %v271 = vunpack.c.l.b16 %v116
    %v272 = vunpack.c.l.b16 %v117
    %v273 = vunpack.c.l.b16 %v118
    %v274 = vunpack.c.l.b16 %v119
    %v275 = vunpack.c.l.b16 %v120
    %v276 = vunpack.c.l.b16 %v121
    %v277 = vunpack.c.l.b16 %v122
    %v278 = vunpack.c.l.b16 %v123
    %v279 = vunpack.c.l.b16 %v124
    %v280 = vunpack.c.l.b16 %v125
    %v281 = vunpack.c.l.b16 %v126
    %v282 = vunpack.c.l.b16 %v127
    %v283 = vunpack.c.l.b16 %v128
    %v284 = vunpack.c.l.b16 %v129
    %v285 = vunpack.c.l.b16 %v130
    %v286 = vunpack.c.l.b16 %v131
    %v287 = vunpack.c.l.b16 %v132
    %v288 = vunpack.c.l.b16 %v133
    %v289 = vunpack.c.l.b16 %v134
    %v290 = vunpack.c.l.b16 %v135
    %v291 = vunpack.c.l.b16 %v136
    %v292 = vunpack.c.l.b16 %v137
    %v293 = vunpack.c.l.b16 %v138
    %v294 = vunpack.c.l.b16 %v139
    %v295 = vunpack.c.l.b16 %v140
    %v296 = vunpack.c.l.b16 %v141
    %v297 = vunpack.c.l.b16 %v142
    %v298 = vunpack.c.l.b16 %v143
    %v299 = vunpack.c.l.b16 %v144
    %v300 = vunpack.c.l.b16 %v145
    %v301 = vunpack.c.l.b16 %v146
    %v302 = vunpack.c.l.b16 %v147
    %v303 = vunpack.c.l.b16 %v148
    %v304 = vunpack.c.l.b16 %v149
    %v305 = vunpack.c.l.b16 %v150
    %v306 = vunpack.c.l.b16 %v151
    %v307 = vunpack.c.l.b16 %v152
    %v308 = vunpack.c.l.b16 %v153
    %v309 = vunpack.c.l.b16 %v154
    %v310 = vunpack.c.l.b16 %v155
    %v311 = vunpack.c.l.b16 %v156
    %v312 = vunpack.c.l.b16 %v157
    %v313 = vunpack.c.l.b16 %v158
    %v314 = vunpack.c.l.b16 %v159
    %v315 = vunpack.c.l.b16 %v160
    %v316 = vunpack.c.l.b16 %v161
    %v317 = vunpack.c.l.b16 %v162
    %v318 = vunpack.c.l.b16 %v163
    %v319 = vunpack.c.l.b16 %v164
    %v320 = vunpack.c.l.b16 %v165
    %v321 = vunpack.c.l.b16 %v166
    %v322 = vunpack.c.l.b16 %v167
    %v323 = vunpack.c.l.b16 %v168
    %v324 = vunpack.c.l.b16 %v169
    %v325 = vpack.c.b16 %v262, %v261
    %v326 = vpack.c.b16 %v264, %v263
    %v327 = vpack.c.b16 %v266, %v265
    %v328 = vpack.c.b16 %v268, %v267
    %v329 = vpack.c.b16 %v270, %v269
    %v330 = vpack.c.b16 %v272, %v271
    %v331 = vpack.c.b16 %v274, %v273
    %v332 = vpack.c.b16 %v276, %v275
    %v333 = vpack.c.b16 %v278, %v277
    %v334 = vpack.c.b16 %v280, %v279
    %v335 = vpack.c.b16 %v282, %v281
    %v336 = vpack.c.b16 %v284, %v283
    %v337 = vpack.c.b16 %v286, %v285
    %v338 = vpack.c.b16 %v288, %v287
    %v339 = vpack.c.b16 %v290, %v289
    %v340 = vpack.c.b16 %v292, %v291
    %v341 = vpack.c.b16 %v294, %v293
    %v342 = vpack.c.b16 %v296, %v295
    %v343 = vpack.c.b16 %v298, %v297
    %v344 = vpack.c.b16 %v300, %v299
    %v345 = vpack.c.b16 %v302, %v301
    %v346 = vpack.c.b16 %v304, %v303
    %v347 = vpack.c.b16 %v306, %v305
    %v348 = vpack.c.b16 %v308, %v307
    %v349 = vpack.c.b16 %v310, %v309
    %v350 = vpack.c.b16 %v312, %v311
    %v351 = vpack.c.b16 %v314, %v313
    %v352 = vpack.c.b16 %v316, %v315
    %v353 = vpack.c.b16 %v318, %v317
    %v354 = vpack.c.b16 %v320, %v319
    %v355 = vpack.c.b16 %v322, %v321
    %v356 = vpack.c.b16 %v324, %v323
    %389 = vmatprep.subr.bf16.mxu0 0
    %390 = vmatpush1.bf16.msra.mxu0 %v332
    %391 = vmatprep.subr.bf16.mxu0 0
    %392 = vmatpush1.bf16.msra.mxu0 %v331
    %393 = vmatprep.subr.bf16.mxu0 0
    %394 = vmatpush1.bf16.msra.mxu0 %v330
    %395 = vmatprep.subr.bf16.mxu0 0
    %396 = vmatpush1.bf16.msra.mxu0 %v329
    %397 = vmatprep.subr.bf16.mxu0 0
    %398 = vmatpush1.bf16.msra.mxu0 %v328
    %399 = vmatprep.subr.bf16.mxu0 0
    %400 = vmatpush1.bf16.msra.mxu0 %v327
    %401 = vmatprep.subr.bf16.mxu0 0
    %402 = vmatpush1.bf16.msra.mxu0 %v326
    %403 = vmatprep.subr.bf16.mxu0 0
    %404 = vmatpush1.bf16.msra.mxu0 %v325
    %405 = vmatprep.subr.bf16.mxu0 0
    %406 = vmatpush2.bf16.msra.mxu0 %v340
    %407 = vmatprep.subr.bf16.mxu0 0
    %408 = vmatpush2.bf16.msra.mxu0 %v339
    %409 = vmatprep.subr.bf16.mxu0 0
    %410 = vmatpush2.bf16.msra.mxu0 %v338
    %411 = vmatprep.subr.bf16.mxu0 0
    %412 = vmatpush2.bf16.msra.mxu0 %v337
    %413 = vmatprep.subr.bf16.mxu0 0
    %414 = vmatpush2.bf16.msra.mxu0 %v336
    %415 = vmatprep.subr.bf16.mxu0 0
    %416 = vmatpush2.bf16.msra.mxu0 %v335
    %417 = vmatprep.subr.bf16.mxu0 0
    %418 = vmatpush2.bf16.msra.mxu0 %v334
    %419 = vmatprep.subr.bf16.mxu0 0
    %420 = vmatpush2.bf16.msra.mxu0 %v333
    %421 = vmatprep.mubr.bf16.mxu0 %v190
    %422 = vmatmul.mubr.bf16.gmra.mxu0 %v189
    %v423 = vpop.f32.mrf.mxu0
    %v424 = vadd.f32 %v175, %v423
    %v425 = vpop.f32.mrf.mxu0
    %v426 = vpop.f32.mrf.mxu0
    %v427 = vadd.f32 %v175, %v426
    %v428 = vpop.f32.mrf.mxu0
    %429 = vdwg.mxu0
    %430 = vmatprep.subr.bf16.mxu0 0
    %431 = vmatpush1.bf16.msra.mxu0 %v348
    %432 = vmatprep.subr.bf16.mxu0 0
    %433 = vmatpush1.bf16.msra.mxu0 %v347
    %434 = vmatprep.subr.bf16.mxu0 0
    %435 = vmatpush1.bf16.msra.mxu0 %v346
    %436 = vmatprep.subr.bf16.mxu0 0
    %437 = vmatpush1.bf16.msra.mxu0 %v345
    %438 = vmatprep.subr.bf16.mxu0 0
    %439 = vmatpush1.bf16.msra.mxu0 %v344
    %440 = vmatprep.subr.bf16.mxu0 0
    %441 = vmatpush1.bf16.msra.mxu0 %v343
    %442 = vmatprep.subr.bf16.mxu0 0
    %443 = vmatpush1.bf16.msra.mxu0 %v342
    %444 = vmatprep.subr.bf16.mxu0 0
    %445 = vmatpush1.bf16.msra.mxu0 %v341
    %446 = vmatprep.subr.bf16.mxu0 0
    %447 = vmatpush2.bf16.msra.mxu0 %v356
    %448 = vmatprep.subr.bf16.mxu0 0
    %449 = vmatpush2.bf16.msra.mxu0 %v355
    %450 = vmatprep.subr.bf16.mxu0 0
    %451 = vmatpush2.bf16.msra.mxu0 %v354
    %452 = vmatprep.subr.bf16.mxu0 0
    %453 = vmatpush2.bf16.msra.mxu0 %v353
    %454 = vmatprep.subr.bf16.mxu0 0
    %455 = vmatpush2.bf16.msra.mxu0 %v352
    %456 = vmatprep.subr.bf16.mxu0 0
    %457 = vmatpush2.bf16.msra.mxu0 %v351
    %458 = vmatprep.subr.bf16.mxu0 0
    %459 = vmatpush2.bf16.msra.mxu0 %v350
    %460 = vmatprep.subr.bf16.mxu0 0
    %461 = vmatpush2.bf16.msra.mxu0 %v349
    %462 = vmatprep.mubr.bf16.mxu0 %v192
    %463 = vmatmul.mubr.bf16.gmra.mxu0 %v191
    %v464 = vpop.f32.mrf.mxu0
    %v465 = vadd.f32 %v424, %v464
    %v466 = vpop.f32.mrf.mxu0
    %v467 = vpop.f32.mrf.mxu0
    %v468 = vadd.f32 %v427, %v467
    %v469 = vpop.f32.mrf.mxu0
    %470 = vdwg.mxu0
    %v471 = vmax.f32 %v465, 0.0
    %v472 = vmax.f32 %v468, 0.0
    %v473 = vpack.c.bf16 %v472, %v471
    %v474 = vld [vmem:[#allocation7] sm:$0xf]
    %v475 = vld [vmem:[#allocation7 + $0x4] sm:$0xf]
    %v476 = vld [vmem:[#allocation7 + $0x8] sm:$0xf]
    %v477 = vld [vmem:[#allocation7 + $0xc] sm:$0xf]
    %v478 = vld [vmem:[#allocation7 + $0x10] sm:$0xf]
    %v479 = vld [vmem:[#allocation7 + $0x14] sm:$0xf]
    %v480 = vld [vmem:[#allocation7 + $0x18] sm:$0xf]
    %v481 = vld [vmem:[#allocation7 + $0x1c] sm:$0xf]
    %v482 = vld [vmem:[#allocation7 + $0x20] sm:$0xf]
    %v483 = vld [vmem:[#allocation7 + $0x24] sm:$0xf]
    %v484 = vld [vmem:[#allocation7 + $0x28] sm:$0xf]
    %v485 = vld [vmem:[#allocation7 + $0x2c] sm:$0xf]
    %v486 = vld [vmem:[#allocation7 + $0x30] sm:$0xf]
    %v487 = vld [vmem:[#allocation7 + $0x34] sm:$0xf]
    %v488 = vld [vmem:[#allocation7 + $0x38] sm:$0xf]
    %v489 = vld [vmem:[#allocation7 + $0x3c] sm:$0xf]
    %v490 = vld [vmem:[%s4] sm:$0x1]
    %v492 = vlaneseq
    %v493 = vshrl.u32 %v492, 7
    %v494 = vsub.s32 0, %v493
    %v495 = vrot.slane %v490, %v494
    %v513 = vunpack.c.l.b16 %v474
    %v514 = vunpack.c.l.b16 %v475
    %v515 = vunpack.c.l.b16 %v476
    %v516 = vunpack.c.l.b16 %v477
    %v517 = vunpack.c.l.b16 %v478
    %v518 = vunpack.c.l.b16 %v479
    %v519 = vunpack.c.l.b16 %v480
    %v520 = vunpack.c.l.b16 %v481
    %v521 = vunpack.c.l.b16 %v482
    %v522 = vunpack.c.l.b16 %v483
    %v523 = vunpack.c.l.b16 %v484
    %v524 = vunpack.c.l.b16 %v485
    %v525 = vunpack.c.l.b16 %v486
    %v526 = vunpack.c.l.b16 %v487
    %v527 = vunpack.c.l.b16 %v488
    %v528 = vunpack.c.l.b16 %v489
    %v529 = vpack.c.b16 %v514, %v513
    %v530 = vpack.c.b16 %v516, %v515
    %v531 = vpack.c.b16 %v518, %v517
    %v532 = vpack.c.b16 %v520, %v519
    %v533 = vpack.c.b16 %v522, %v521
    %v534 = vpack.c.b16 %v524, %v523
    %v535 = vpack.c.b16 %v526, %v525
    %v536 = vpack.c.b16 %v528, %v527
    %545 = vmatprep.subr.bf16.mxu0 0
    %546 = vmatpush1.bf16.msra.mxu0 %v536
    %547 = vmatprep.subr.bf16.mxu0 0
    %548 = vmatpush1.bf16.msra.mxu0 %v535
    %549 = vmatprep.subr.bf16.mxu0 0
    %550 = vmatpush1.bf16.msra.mxu0 %v534
    %551 = vmatprep.subr.bf16.mxu0 0
    %552 = vmatpush1.bf16.msra.mxu0 %v533
    %553 = vmatprep.subr.bf16.mxu0 0
    %554 = vmatpush1.bf16.msra.mxu0 %v532
    %555 = vmatprep.subr.bf16.mxu0 0
    %556 = vmatpush1.bf16.msra.mxu0 %v531
    %557 = vmatprep.subr.bf16.mxu0 0
    %558 = vmatpush1.bf16.msra.mxu0 %v530
    %559 = vmatprep.subr.bf16.mxu0 0
    %560 = vmatpush1.bf16.msra.mxu0 %v529
    %561 = vmatprep.subr.bf16.mxu0 0
    %562 = vmatpush2.bf16.msra.mxu0 0
    %563 = vmatprep.subr.bf16.mxu0 0
    %564 = vmatpush2.bf16.msra.mxu0 0
    %565 = vmatprep.subr.bf16.mxu0 0
    %566 = vmatpush2.bf16.msra.mxu0 0
    %567 = vmatprep.subr.bf16.mxu0 0
    %568 = vmatpush2.bf16.msra.mxu0 0
    %569 = vmatprep.subr.bf16.mxu0 0
    %570 = vmatpush2.bf16.msra.mxu0 0
    %571 = vmatprep.subr.bf16.mxu0 0
    %572 = vmatpush2.bf16.msra.mxu0 0
    %573 = vmatprep.subr.bf16.mxu0 0
    %574 = vmatpush2.bf16.msra.mxu0 0
    %575 = vmatprep.subr.bf16.mxu0 0
    %576 = vmatpush2.bf16.msra.mxu0 0
    %577 = vmatprep.mubr.bf16.mxu0 0
    %578 = vmatmul.mubr.bf16.gmra.mxu0 %v473
    %v579 = vpop.f32.mrf.mxu0
    %v580 = vadd.f32 %v495, %v579
    %v581 = vpop.f32.mrf.mxu0
    %v582 = vpop.f32.mrf.mxu0
    %v583 = vadd.f32 %v495, %v582
    %v584 = vpop.f32.mrf.mxu0
    %585 = vdwg.mxu0
    %v586 = vmax.f32 %v580, 0.0
    %v587 = vmax.f32 %v583, 0.0
    %v588 = vadd.f32 %v586, %v471
    %v589 = vadd.f32 %v587, %v472
    %v590 = vpack.c.bf16 %v589, %v588
    %v591 = vld [vmem:[#allocation8] sm:$0xf]
    %v592 = vld [vmem:[#allocation8 + $0x4] sm:$0xf]
    %v593 = vld [vmem:[#allocation8 + $0x8] sm:$0xf]
    %v594 = vld [vmem:[#allocation8 + $0xc] sm:$0xf]
    %v595 = vld [vmem:[#allocation8 + $0x10] sm:$0xf]
    %v596 = vld [vmem:[#allocation8 + $0x14] sm:$0xf]
    %v597 = vld [vmem:[#allocation8 + $0x18] sm:$0xf]
    %v598 = vld [vmem:[#allocation8 + $0x1c] sm:$0xf]
    %v599 = vld [vmem:[#allocation8 + $0x20] sm:$0xf]
    %v600 = vld [vmem:[#allocation8 + $0x24] sm:$0xf]
    %v601 = vld [vmem:[#allocation8 + $0x28] sm:$0xf]
    %v602 = vld [vmem:[#allocation8 + $0x2c] sm:$0xf]
    %v603 = vld [vmem:[#allocation8 + $0x30] sm:$0xf]
    %v604 = vld [vmem:[#allocation8 + $0x34] sm:$0xf]
    %v605 = vld [vmem:[#allocation8 + $0x38] sm:$0xf]
    %v606 = vld [vmem:[#allocation8 + $0x3c] sm:$0xf]
    %v607 = vld [vmem:[%s6] sm:$0x1]
    %v609 = vlaneseq
    %v610 = vshrl.u32 %v609, 7
    %v611 = vsub.s32 0, %v610
    %v612 = vrot.slane %v607, %v611
    %v630 = vunpack.c.l.b16 %v591
    %v631 = vunpack.c.l.b16 %v592
    %v632 = vunpack.c.l.b16 %v593
    %v633 = vunpack.c.l.b16 %v594
    %v634 = vunpack.c.l.b16 %v595
    %v635 = vunpack.c.l.b16 %v596
    %v636 = vunpack.c.l.b16 %v597
    %v637 = vunpack.c.l.b16 %v598
    %v638 = vunpack.c.l.b16 %v599
    %v639 = vunpack.c.l.b16 %v600
    %v640 = vunpack.c.l.b16 %v601
    %v641 = vunpack.c.l.b16 %v602
    %v642 = vunpack.c.l.b16 %v603
    %v643 = vunpack.c.l.b16 %v604
    %v644 = vunpack.c.l.b16 %v605
    %v645 = vunpack.c.l.b16 %v606
    %v646 = vpack.c.b16 %v631, %v630
    %v647 = vpack.c.b16 %v633, %v632
    %v648 = vpack.c.b16 %v635, %v634
    %v649 = vpack.c.b16 %v637, %v636
    %v650 = vpack.c.b16 %v639, %v638
    %v651 = vpack.c.b16 %v641, %v640
    %v652 = vpack.c.b16 %v643, %v642
    %v653 = vpack.c.b16 %v645, %v644
    %662 = vmatprep.subr.bf16.mxu0 0
    %663 = vmatpush1.bf16.msra.mxu0 %v653
    %664 = vmatprep.subr.bf16.mxu0 0
    %665 = vmatpush1.bf16.msra.mxu0 %v652
    %666 = vmatprep.subr.bf16.mxu0 0
    %667 = vmatpush1.bf16.msra.mxu0 %v651
    %668 = vmatprep.subr.bf16.mxu0 0
    %669 = vmatpush1.bf16.msra.mxu0 %v650
    %670 = vmatprep.subr.bf16.mxu0 0
    %671 = vmatpush1.bf16.msra.mxu0 %v649
    %672 = vmatprep.subr.bf16.mxu0 0
    %673 = vmatpush1.bf16.msra.mxu0 %v648
    %674 = vmatprep.subr.bf16.mxu0 0
    %675 = vmatpush1.bf16.msra.mxu0 %v647
    %676 = vmatprep.subr.bf16.mxu0 0
    %677 = vmatpush1.bf16.msra.mxu0 %v646
    %678 = vmatprep.subr.bf16.mxu0 0
    %679 = vmatpush2.bf16.msra.mxu0 0
    %680 = vmatprep.subr.bf16.mxu0 0
    %681 = vmatpush2.bf16.msra.mxu0 0
    %682 = vmatprep.subr.bf16.mxu0 0
    %683 = vmatpush2.bf16.msra.mxu0 0
    %684 = vmatprep.subr.bf16.mxu0 0
    %685 = vmatpush2.bf16.msra.mxu0 0
    %686 = vmatprep.subr.bf16.mxu0 0
    %687 = vmatpush2.bf16.msra.mxu0 0
    %688 = vmatprep.subr.bf16.mxu0 0
    %689 = vmatpush2.bf16.msra.mxu0 0
    %690 = vmatprep.subr.bf16.mxu0 0
    %691 = vmatpush2.bf16.msra.mxu0 0
    %692 = vmatprep.subr.bf16.mxu0 0
    %693 = vmatpush2.bf16.msra.mxu0 0
    %694 = vmatprep.mubr.bf16.mxu0 0
    %695 = vmatmul.mubr.bf16.gmra.mxu0 %v590
    %v696 = vpop.f32.mrf.mxu0
    %v697 = vadd.f32 %v612, %v696
    %v698 = vpop.f32.mrf.mxu0
    %v699 = vpop.f32.mrf.mxu0
    %v700 = vadd.f32 %v612, %v699
    %v701 = vpop.f32.mrf.mxu0
    %702 = vdwg.mxu0
    %v703 = vmax.f32 %v697, 0.0
    %v704 = vmax.f32 %v700, 0.0
    %v705 = vadd.f32 %v703, %v588
    %v706 = vadd.f32 %v704, %v589
    %v707 = vpack.c.bf16 %v706, %v705
    %v708 = vld [vmem:[#allocation10] sm:$0xf]
    %v709 = vld [vmem:[#allocation10 + $0x4] sm:$0xf]
    %v710 = vld [vmem:[#allocation10 + $0x8] sm:$0xf]
    %v711 = vld [vmem:[#allocation10 + $0xc] sm:$0xf]
    %v712 = vld [vmem:[#allocation10 + $0x10] sm:$0xf]
    %v713 = vld [vmem:[#allocation10 + $0x14] sm:$0xf]
    %v714 = vld [vmem:[#allocation10 + $0x18] sm:$0xf]
    %v715 = vld [vmem:[#allocation10 + $0x1c] sm:$0xf]
    %v716 = vld [vmem:[#allocation10 + $0x20] sm:$0xf]
    %v717 = vld [vmem:[#allocation10 + $0x24] sm:$0xf]
    %v718 = vld [vmem:[#allocation10 + $0x28] sm:$0xf]
    %v719 = vld [vmem:[#allocation10 + $0x2c] sm:$0xf]
    %v720 = vld [vmem:[#allocation10 + $0x30] sm:$0xf]
    %v721 = vld [vmem:[#allocation10 + $0x34] sm:$0xf]
    %v722 = vld [vmem:[#allocation10 + $0x38] sm:$0xf]
    %v723 = vld [vmem:[#allocation10 + $0x3c] sm:$0xf]
    %v724 = vld [vmem:[%s8] sm:$0x1]
    %v726 = vlaneseq
    %v727 = vshrl.u32 %v726, 7
    %v728 = vsub.s32 0, %v727
    %v729 = vrot.slane %v724, %v728
    %v747 = vunpack.c.l.b16 %v708
    %v748 = vunpack.c.l.b16 %v709
    %v749 = vunpack.c.l.b16 %v710
    %v750 = vunpack.c.l.b16 %v711
    %v751 = vunpack.c.l.b16 %v712
    %v752 = vunpack.c.l.b16 %v713
    %v753 = vunpack.c.l.b16 %v714
    %v754 = vunpack.c.l.b16 %v715
    %v755 = vunpack.c.l.b16 %v716
    %v756 = vunpack.c.l.b16 %v717
    %v757 = vunpack.c.l.b16 %v718
    %v758 = vunpack.c.l.b16 %v719
    %v759 = vunpack.c.l.b16 %v720
    %v760 = vunpack.c.l.b16 %v721
    %v761 = vunpack.c.l.b16 %v722
    %v762 = vunpack.c.l.b16 %v723
    %v763 = vpack.c.b16 %v748, %v747
    %v764 = vpack.c.b16 %v750, %v749
    %v765 = vpack.c.b16 %v752, %v751
    %v766 = vpack.c.b16 %v754, %v753
    %v767 = vpack.c.b16 %v756, %v755
    %v768 = vpack.c.b16 %v758, %v757
    %v769 = vpack.c.b16 %v760, %v759
    %v770 = vpack.c.b16 %v762, %v761
    %779 = vmatprep.subr.bf16.mxu0 0
    %780 = vmatpush1.bf16.msra.mxu0 %v770
    %781 = vmatprep.subr.bf16.mxu0 0
    %782 = vmatpush1.bf16.msra.mxu0 %v769
    %783 = vmatprep.subr.bf16.mxu0 0
    %784 = vmatpush1.bf16.msra.mxu0 %v768
    %785 = vmatprep.subr.bf16.mxu0 0
    %786 = vmatpush1.bf16.msra.mxu0 %v767
    %787 = vmatprep.subr.bf16.mxu0 0
    %788 = vmatpush1.bf16.msra.mxu0 %v766
    %789 = vmatprep.subr.bf16.mxu0 0
    %790 = vmatpush1.bf16.msra.mxu0 %v765
    %791 = vmatprep.subr.bf16.mxu0 0
    %792 = vmatpush1.bf16.msra.mxu0 %v764
    %793 = vmatprep.subr.bf16.mxu0 0
    %794 = vmatpush1.bf16.msra.mxu0 %v763
    %795 = vmatprep.subr.bf16.mxu0 0
    %796 = vmatpush2.bf16.msra.mxu0 0
    %797 = vmatprep.subr.bf16.mxu0 0
    %798 = vmatpush2.bf16.msra.mxu0 0
    %799 = vmatprep.subr.bf16.mxu0 0
    %800 = vmatpush2.bf16.msra.mxu0 0
    %801 = vmatprep.subr.bf16.mxu0 0
    %802 = vmatpush2.bf16.msra.mxu0 0
    %803 = vmatprep.subr.bf16.mxu0 0
    %804 = vmatpush2.bf16.msra.mxu0 0
    %805 = vmatprep.subr.bf16.mxu0 0
    %806 = vmatpush2.bf16.msra.mxu0 0
    %807 = vmatprep.subr.bf16.mxu0 0
    %808 = vmatpush2.bf16.msra.mxu0 0
    %809 = vmatprep.subr.bf16.mxu0 0
    %810 = vmatpush2.bf16.msra.mxu0 0
    %811 = vmatprep.mubr.bf16.mxu0 0
    %812 = vmatmul.mubr.bf16.gmra.mxu0 %v707
    %v813 = vpop.f32.mrf.mxu0
    %v814 = vadd.f32 %v729, %v813
    %v815 = vpop.f32.mrf.mxu0
    %v816 = vpop.f32.mrf.mxu0
    %v817 = vadd.f32 %v729, %v816
    %v818 = vpop.f32.mrf.mxu0
    %819 = vdwg.mxu0
    %820 = vst [vmem:[#allocation11] sm:$0xff] %v814
    %821 = vst [vmem:[#allocation11 + $0x8] sm:$0xff] %v817
    // Predicated region
    $region58: #{tpu_custom_call.1} parent=1 // pred_check
      _
    $region59: #{tpu_custom_call.1} parent=1 // pred_check_branch
      %823 = sbr.rel (0) target = $region61
    $region60: #{tpu_custom_call.1} parent=1 // pred_region
      %s825 = ssub.s32 256, 256
      %826 = vsyncadd [#allocation4], %s825
      %s827 = sshll.u32 [#allocation11], 4
      %s828 = int_to_ptr.vmem [resolvable:$true] %s827
      %833 = dma.vmem_to_hbm [thread:$0]  %s828, 256, %s9, [#allocation4], 128, 128, 8
    $region61: #{tpu_custom_call.1} parent=1 // pred_fallthru
      _
    // Predicated region
    $region62: #{tpu_custom_call.1} parent=1 // pred_check
      _
    $region63: #{tpu_custom_call.1} parent=1 // pred_check_branch
      %835 = sbr.rel (0) target = $region65
    $region64: #{tpu_custom_call.1} parent=1 // pred_region
      %836 = dma.done [#allocation4], 256
    $region65: #{tpu_custom_call.1} parent=1 // pred_fallthru
      _
    %837 = vsyncpa [#allocation3], 1
    %838 = vsyncpa [#allocation6], 1
    %839 = vsyncpa [#allocation9], 1
    %840 = vsyncpa [#allocation4], 1

</llo_original>
